<compile_context>
chip_gen: v6e
topology: v6e:2x2x1
jax: 0.10.0
libtpu: 0.0.40
codegen_flags: <defaults>
</compile_context>

<pallas_src>
import functools

import jax
import jax.numpy as jnp
from jax.experimental import pallas as pl
from jax.experimental.pallas import tpu as pltpu


# ----------------------------------------------------------------------------- utils
def _round_up(x, m):
    return (x + m - 1) // m * m


def _choose_tile(d, align, max_mult):
    """Pad d up to a multiple of `align`; tile = largest multiple of `align` that
    divides the padded size and is <= align * max_mult.  Returns (tile, padded)."""
    dp = _round_up(max(d, 1), align)
    q = dp // align
    for m in range(min(max_mult, q), 0, -1):
        if q % m == 0:
            return m * align, dp
    return align, dp


_TM_MAX = 64   # M tile up to 512 rows  (multiple of 8)
_TK_MAX = 4    # K tile up to 512       (multiple of 128, MXU friendly)
_TN_MAX = 2    # N tile up to 256       (multiple of 128)


def _mm_tiles(M, K, N):
    tm, Mp = _choose_tile(M, 8, _TM_MAX)
    tk, Kp = _choose_tile(K, 128, _TK_MAX)
    tn, Np = _choose_tile(N, 128, _TN_MAX)
    return (tm, Mp), (tk, Kp), (tn, Np)


def _row_tile(M, cap=512):
    """Row-block for elementwise/pool kernels: divisor of M, multiple of 8, <= cap."""
    if M <= cap:
        return M
    for t in range(cap - cap % 8, 7, -8):
        if M % t == 0:
            return t
    return M


# --------------------------------------------------------------------- Pallas kernels
def _mm_kernel(x_ref, w_ref, s_ref, b_ref, o_ref, acc_ref, *, relu):
    # out = act((X @ W) * scale + bias) -- conv-as-matmul + folded BN (+ ReLU)
    k = pl.program_id(2)

    @pl.when(k == 0)
    def _():
        acc_ref[...] = jnp.zeros_like(acc_ref)

    acc_ref[...] += jnp.dot(x_ref[...], w_ref[...],
                            preferred_element_type=jnp.float32)

    @pl.when(k == pl.num_programs(2) - 1)
    def _():
        out = acc_ref[...] * s_ref[...] + b_ref[...]
        if relu:
            out = jnp.maximum(out, 0.0)
        o_ref[...] = out.astype(o_ref.dtype)


def _mm_res_kernel(x_ref, w_ref, s_ref, b_ref, r_ref, o_ref, acc_ref, *, relu):
    # same as above, but fuses a residual / skip add into the epilogue
    k = pl.program_id(2)

    @pl.when(k == 0)
    def _():
        acc_ref[...] = jnp.zeros_like(acc_ref)

    acc_ref[...] += jnp.dot(x_ref[...], w_ref[...],
                            preferred_element_type=jnp.float32)

    @pl.when(k == pl.num_programs(2) - 1)
    def _():
        out = acc_ref[...] * s_ref[...] + b_ref[...] + r_ref[...].astype(jnp.float32)
        if relu:
            out = jnp.maximum(out, 0.0)
        o_ref[...] = out.astype(o_ref.dtype)


def _maxpool_kernel(x_ref, o_ref, *, C):
    # x: (bm, 2, W/2, 2*C) -> max over h-parity (axis 1) and w-parity (channel halves)
    x = x_ref[...]
    m = jnp.maximum(x[:, 0, :, :], x[:, 1, :, :])
    o_ref[...] = jnp.maximum(m[:, :, :C], m[:, :, C:])


# --------------------------------------------------------------------- fused matmul
def fused_matmul(patches, layer, residual=None, relu=False, out_dtype=jnp.bfloat16):
    """patches: (M, K) bf16.  layer: pre-padded weights/scale/bias (see prep_conv).
    residual: optional (M, N).  Returns (M, N) in out_dtype."""
    M, K = patches.shape
    N = layer['N']
    assert K == layer['K']
    (tm, Mp), (tk, Kp), (tn, Np) = _mm_tiles(M, K, N)
    assert layer['w'].shape == (Kp, Np)

    xp = patches
    if (Mp, Kp) != (M, K):
        xp = jnp.pad(patches, ((0, Mp - M), (0, Kp - K)))

    grid = (Mp // tm, Np // tn, Kp // tk)
    in_specs = [
        pl.BlockSpec((tm, tk), lambda i, j, k: (i, k)),
        pl.BlockSpec((tk, tn), lambda i, j, k: (k, j)),
        pl.BlockSpec((1, tn), lambda i, j, k: (0, j)),
        pl.BlockSpec((1, tn), lambda i, j, k: (0, j)),
    ]
    args = [xp, layer['w'], layer['scale'], layer['bias']]

    if residual is not None:
        rp = residual.astype(jnp.bfloat16)
        if (Mp, Np) != (M, N):
            rp = jnp.pad(rp, ((0, Mp - M), (0, Np - N)))
        in_specs.append(pl.BlockSpec((tm, tn), lambda i, j, k: (i, j)))
        args.append(rp)
        kernel = functools.partial(_mm_res_kernel, relu=relu)
    else:
        kernel = functools.partial(_mm_kernel, relu=relu)

    out = pl.pallas_call(
        kernel,
        out_shape=jax.ShapeDtypeStruct((Mp, Np), out_dtype),
        grid=grid,
        in_specs=in_specs,
        out_specs=pl.BlockSpec((tm, tn), lambda i, j, k: (i, j)),
        scratch_shapes=[pltpu.VMEM((tm, tn), jnp.float32)],
        compiler_params=pltpu.CompilerParams(
            dimension_semantics=("parallel", "parallel", "arbitrary"),
            vmem_limit_bytes=32 * 1024 * 1024),
    )(*args)
    if (Mp, Np) != (M, N):
        out = out[:M, :N]
    return out


# ---------------------------------------------------------------------- conv plumbing
def im2col(x, kh, kw, stride, pad):
    """x: NHWC -> (N*Ho*Wo, kh*kw*C), patch feature order (kh, kw, C)."""
    # TODO(synk): build patches inside the kernel (overlapping-window BlockSpec)
    # instead of materializing the kh*kw-expanded matrix in HBM.
    if pad:
        x = jnp.pad(x, ((0, 0), (pad, pad), (pad, pad), (0, 0)))
    N, H, W, C = x.shape
    Ho = (H - kh) // stride + 1
    Wo = (W - kw) // stride + 1
    if kh == 1 and kw == 1 and stride == 1:
        return x.reshape(N * H * W, C), N, Ho, Wo
    cols = [x[:, i:i + stride * Ho:stride, j:j + stride * Wo:stride, :]
            for i in range(kh) for j in range(kw)]
    patches = jnp.concatenate(cols, axis=-1)
    return patches.reshape(N * Ho * Wo, kh * kw * C), N, Ho, Wo


def conv2d(x, layer, stride, pad, residual=None, relu=False, out_dtype=jnp.bfloat16):
    patches, N, Ho, Wo = im2col(x.astype(jnp.bfloat16), layer['kh'], layer['kw'],
                                stride, pad)
    res = None
    if residual is not None:
        res = residual.reshape(N * Ho * Wo, layer['N'])
    out = fused_matmul(patches, layer, residual=res, relu=relu, out_dtype=out_dtype)
    return out.reshape(N, Ho, Wo, layer['N'])


def conv_transpose2d(x, phases, skip=None):
    """PyTorch ConvTranspose2d(k=4, s=2, p=1), decomposed into four 2x2 stride-1
    phase convolutions (no zero-dilation).  Optionally fuses `out + skip`."""
    N, H, W, _ = x.shape
    Cout = phases[0]['N']
    xp = jnp.pad(x, ((0, 0), (1, 1), (1, 1), (0, 0)))
    ys = []
    for ry in range(2):
        for rx in range(2):
            xin = xp[:, ry:ry + H + 1, rx:rx + W + 1, :]
            res = None if skip is None else skip[:, ry::2, rx::2, :]
            y = conv2d(xin, phases[2 * ry + rx], stride=1, pad=0,
                       residual=res, relu=False)
            ys.append(y)                     # (N, H, W, Cout)
    row0 = jnp.stack([ys[0], ys[1]], axis=3)  # rx interleave
    row1 = jnp.stack([ys[2], ys[3]], axis=3)
    out = jnp.stack([row0, row1], axis=2)     # ry interleave -> (N,H,2,W,2,C)
    return out.reshape(N, 2 * H, 2 * W, Cout)


def maxpool2(x):
    """2x2 max-pool, stride 2 (NHWC) in a single Pallas kernel (free reshapes only)."""
    N, H, W, C = x.shape
    x = x[:, :H // 2 * 2, :W // 2 * 2, :]
    H, W = H // 2 * 2, W // 2 * 2
    M2 = N * (H // 2)
    xr = x.reshape(M2, 2, W // 2, 2 * C)       # row-major, no data movement
    bm = _row_tile(M2)
    out = pl.pallas_call(
        functools.partial(_maxpool_kernel, C=C),
        out_shape=jax.ShapeDtypeStruct((M2, W // 2, C), x.dtype),
        grid=(M2 // bm,),
        in_specs=[pl.BlockSpec((bm, 2, W // 2, 2 * C), lambda i: (i, 0, 0, 0))],
        out_specs=pl.BlockSpec((bm, W // 2, C), lambda i: (i, 0, 0)),
        compiler_params=pltpu.CompilerParams(dimension_semantics=("parallel",)),
    )(xr)
    return out.reshape(N, H // 2, W // 2, C)


# ------------------------------------------------------------- parameter preparation
def bn_fold(gamma, beta, mean, var, eps=1e-5):
    scale = gamma / jnp.sqrt(var + eps)
    bias = beta - mean * scale
    return scale, bias


def prep_conv(w_oihw, scale=None, bias=None):
    """Fold a conv (+optional BN scale/bias) into a padded bf16 (Kp, Np) weight
    matrix plus f32 scale/bias rows, done ONCE at prepare time."""
    Cout, Cin, kh, kw = w_oihw.shape
    K, N = kh * kw * Cin, Cout
    (_, _), (tk, Kp), (tn, Np) = _mm_tiles(8, K, N)
    wmat = jnp.transpose(w_oihw, (2, 3, 1, 0)).reshape(K, N)
    wp = jnp.zeros((Kp, Np), jnp.bfloat16).at[:K, :N].set(wmat.astype(jnp.bfloat16))
    if scale is None:
        scale = jnp.ones((N,), jnp.float32)
    if bias is None:
        bias = jnp.zeros((N,), jnp.float32)
    sp = jnp.zeros((1, Np), jnp.float32).at[0, :N].set(scale.astype(jnp.float32))
    bp = jnp.zeros((1, Np), jnp.float32).at[0, :N].set(bias.astype(jnp.float32))
    return {'w': wp, 'scale': sp, 'bias': bp, 'K': K, 'N': N, 'kh': kh, 'kw': kw}


def prep_conv_transpose(w_iohw, b):
    """Split a (Cin, Cout, 4, 4) transposed-conv weight (stride 2, pad 1) into the
    four 2x2 phase sub-kernels of the forward-conv decomposition."""
    Cin, Cout, kh, kw = w_iohw.shape
    assert (kh, kw) == (4, 4)
    phases = []
    for ry in range(2):
        for rx in range(2):
            ky = [3, 1] if ry == 0 else [2, 0]
            kx = [3, 1] if rx == 0 else [2, 0]
            w_sub = w_iohw[:, :, ky, :][:, :, :, kx]        # (Cin, Cout, 2, 2)
            w_oihw = jnp.transpose(w_sub, (1, 0, 2, 3))     # (Cout, Cin, 2, 2)
            phases.append(prep_conv(w_oihw, scale=None, bias=b))
    return phases


def init_params(key, in_channels=3, num_centers=3, num_keypoints=3, feat_dim=256):
    keys = iter(jax.random.split(key, 128))

    def nxt():
        return next(keys)

    def conv_w(cout, cin, k):
        return 0.05 * jax.random.normal(nxt(), (cout, cin, k, k), jnp.float32)

    def vec(c, scale=0.1):
        return scale * jax.random.normal(nxt(), (c,), jnp.float32)

    def bn(c):
        g = 1.0 + 0.1 * jax.random.normal(nxt(), (c,), jnp.float32)
        b = 0.1 * jax.random.normal(nxt(), (c,), jnp.float32)
        m = 0.1 * jax.random.normal(nxt(), (c,), jnp.float32)
        v = 1.0 + 0.1 * jnp.abs(jax.random.normal(nxt(), (c,), jnp.float32))
        return (g, b, m, v)

    def res(c):
        return {'conv1': conv_w(c, c, 3), 'bn1': bn(c),
                'conv2': conv_w(c, c, 3), 'bn2': bn(c)}

    return {
        'down1_w': conv_w(64, in_channels, 7), 'down1_bn': bn(64),
        'res1': res(64),
        'down2_w': conv_w(128, 64, 3), 'down2_bn': bn(128),
        'res2': res(128),
        'down3_w': conv_w(256, 128, 3), 'down3_bn': bn(256),
        'res3': res(256),
        'up2_w': 0.05 * jax.random.normal(nxt(), (256, 128, 4, 4), jnp.float32),
        'up2_b': vec(128),
        'res4': res(128),
        'up1_w': 0.05 * jax.random.normal(nxt(), (128, 64, 4, 4), jnp.float32),
        'up1_b': vec(64),
        'res5': res(64),
        'center_w': conv_w(num_centers, 64, 1), 'center_b': vec(num_centers),
        'keypoint_w': conv_w(num_keypoints, 64, 1), 'keypoint_b': vec(num_keypoints),
        'center_regr_w': conv_w(2, 64, 1), 'center_regr_b': vec(2),
        'keypoint_regr_w': conv_w(2, 64, 1), 'keypoint_regr_b': vec(2),
        'feat_w': conv_w(feat_dim, 64, 1), 'feat_b': vec(feat_dim),
    }


def prepare_params(p):
    """Fold BN, pre-pad/transpose all weights (loop-invariant), fuse the 5 heads."""
    def conv_bn(wk, bnk):
        s, b = bn_fold(*p[bnk])
        return prep_conv(p[wk], s, b)

    def res(name):
        s1, b1 = bn_fold(*p[name]['bn1'])
        s2, b2 = bn_fold(*p[name]['bn2'])
        return {'c1': prep_conv(p[name]['conv1'], s1, b1),
                'c2': prep_conv(p[name]['conv2'], s2, b2)}

    head_w = jnp.concatenate([p['center_w'], p['keypoint_w'], p['center_regr_w'],
                              p['keypoint_regr_w'], p['feat_w']], axis=0)
    head_b = jnp.concatenate([p['center_b'], p['keypoint_b'], p['center_regr_b'],
                              p['keypoint_regr_b'], p['feat_b']], axis=0)
    return {
        'down1': conv_bn('down1_w', 'down1_bn'), 'res1': res('res1'),
        'down2': conv_bn('down2_w', 'down2_bn'), 'res2': res('res2'),
        'down3': conv_bn('down3_w', 'down3_bn'), 'res3': res('res3'),
        'up2': prep_conv_transpose(p['up2_w'], p['up2_b']), 'res4': res('res4'),
        'up1': prep_conv_transpose(p['up1_w'], p['up1_b']), 'res5': res('res5'),
        'heads': prep_conv(head_w, None, head_b),
        'head_splits': (p['center_w'].shape[0], p['keypoint_w'].shape[0],
                        p['center_regr_w'].shape[0], p['keypoint_regr_w'].shape[0],
                        p['feat_w'].shape[0]),
    }


# ----------------------------------------------------------------------------- forward
def residual_block(x, rp):
    h = conv2d(x, rp['c1'], stride=1, pad=1, relu=True)
    # F.relu(x + conv(x)) -- residual add + ReLU fused into the second conv epilogue
    return conv2d(h, rp['c2'], stride=1, pad=1, residual=x, relu=True)


def hourglass_forward(x_nchw, pp):
    x = jnp.transpose(x_nchw, (0, 2, 3, 1)).astype(jnp.bfloat16)  # NCHW -> NHWC

    d1 = conv2d(x, pp['down1'], stride=2, pad=3, relu=True)
    d2 = maxpool2(d1)
    d2 = residual_block(d2, pp['res1'])

    d3 = conv2d(d2, pp['down2'], stride=2, pad=1, relu=True)
    d3 = residual_block(d3, pp['res2'])

    d4 = conv2d(d3, pp['down3'], stride=2, pad=1, relu=True)
    d4 = residual_block(d4, pp['res3'])

    # TODO(synk): bilinear-resize fallback (F.interpolate) for spatial sizes not
    # divisible by 8; never triggered for the shapes used here.
    u2 = conv_transpose2d(d4, pp['up2'], skip=d3)   # up2(d4) + d3 (fused add)
    u2 = residual_block(u2, pp['res4'])

    u1 = conv_transpose2d(u2, pp['up1'], skip=d2)   # up1(u2) + d2 (fused add)
    final_feat = residual_block(u1, pp['res5'])

    # five 1x1 heads fused into a single lane-dense matmul, split afterwards
    heads = conv2d(final_feat, pp['heads'], stride=1, pad=0, relu=False,
                   out_dtype=jnp.float32)
    sizes = pp['head_splits']
    offs = [0]
    for s in sizes:
        offs.append(offs[-1] + s)

    def take(i):
        y = heads[..., offs[i]:offs[i + 1]]
        return jnp.transpose(y, (0, 3, 1, 2))       # back to NCHW like PyTorch

    return {
        'center_heatmap': take(0),
        'keypoint_heatmap': take(1),
        'center_regr': take(2),
        'keypoint_regr': take(3),
        'output_feature_map': take(4),
    }


# --------------------------------------------------------------------------------- main
if __name__ == "__main__":
    key = jax.random.PRNGKey(0)
    k_param, k_x = jax.random.split(key)
    raw_params = init_params(k_param, in_channels=3, num_centers=3, num_keypoints=3,
                             feat_dim=256)
    params = prepare_params(raw_params)
    x = jax.random.normal(k_x, (2, 3, 16, 16), jnp.float32)  # NCHW like PyTorch

    out = hourglass_forward(x, params)
    out = jax.tree_util.tree_map(jax.block_until_ready, out)

    # sanity: shapes match PyTorch forward (heads at H/4, W/4)
    assert out['center_heatmap'].shape == (2, 3, 4, 4)
    assert out['keypoint_heatmap'].shape == (2, 3, 4, 4)
    assert out['center_regr'].shape == (2, 2, 4, 4)
    assert out['keypoint_regr'].shape == (2, 2, 4, 4)
    assert out['output_feature_map'].shape == (2, 256, 4, 4)

    print("KERNEL_OK")
</pallas_src>

<mosaic_0001>
module attributes {stable_mosaic.version = 11 : i64} {
  func.func @_mm_kernel(%arg0: i32, %arg1: i32, %arg2: i32, %arg3: memref<128x256xbf16, #tpu.memory_space<vmem>>, %arg4: memref<256x128xbf16, #tpu.memory_space<vmem>>, %arg5: memref<1x128xf32, #tpu.memory_space<vmem>>, %arg6: memref<1x128xf32, #tpu.memory_space<vmem>>, %arg7: memref<128x128xbf16, #tpu.memory_space<vmem>>, %arg8: memref<128x128xf32, #tpu.memory_space<vmem>>) attributes {dimension_semantics = [#tpu.dimension_semantics<parallel>, #tpu.dimension_semantics<parallel>, #tpu.dimension_semantics<arbitrary>], iteration_bounds = array<i64: 1, 1, 1>, scalar_prefetch = 0 : i64, scratch_operands = 1 : i64, tpu.core_type = #tpu.core_type<tc>, window_params = [{transform_indices = @transform_0, window_bounds = array<i64: 128, 256>}, {transform_indices = @transform_1, window_bounds = array<i64: 256, 128>}, {transform_indices = @transform_2, window_bounds = array<i64: 1, 128>}, {transform_indices = @transform_3, window_bounds = array<i64: 1, 128>}, {transform_indices = @transform_4, window_bounds = array<i64: 128, 128>}]} {
    %c0_i32 = arith.constant 0 : i32
    %0 = arith.cmpi eq, %arg2, %c0_i32 : i32
    %1 = arith.extui %0 : i1 to i32
    %c0_i32_0 = arith.constant 0 : i32
    %2 = arith.cmpi ne, %1, %c0_i32_0 : i32
    scf.if %2 {
      %cst_10 = arith.constant 0.000000e+00 : f32
      %12 = vector.broadcast %cst_10 : f32 to vector<128x128xf32>
      %c0_11 = arith.constant 0 : index
      %c0_12 = arith.constant 0 : index
      %13 = vector.load %arg8[%c0_11, %c0_12] : memref<128x128xf32, #tpu.memory_space<vmem>>, vector<128x128xf32>
      tpu.vector_store %arg8[%c0_11, %c0_12], %12 {strides = array<i32>} : memref<128x128xf32, #tpu.memory_space<vmem>>, vector<128x128xf32>,
    } else {
    }
    %c0 = arith.constant 0 : index
    %c0_1 = arith.constant 0 : index
    %3 = vector.load %arg8[%c0, %c0_1] : memref<128x128xf32, #tpu.memory_space<vmem>>, vector<128x128xf32>
    %c0_2 = arith.constant 0 : index
    %c0_3 = arith.constant 0 : index
    %4 = vector.load %arg3[%c0_2, %c0_3] : memref<128x256xbf16, #tpu.memory_space<vmem>>, vector<128x256xbf16>
    %c0_4 = arith.constant 0 : index
    %c0_5 = arith.constant 0 : index
    %5 = vector.load %arg4[%c0_4, %c0_5] : memref<256x128xbf16, #tpu.memory_space<vmem>>, vector<256x128xbf16>
    %cst = arith.constant dense<0.000000e+00> : vector<128x128xf32>
    %6 = tpu.matmul %4, %5, %cst {dimension_numbers = #tpu.dot_dimension_numbers<[1], [0], [0], [1], [0, 0, 1, 1], [], []>} : vector<128x256xbf16>, vector<256x128xbf16>, vector<128x128xf32> -> vector<128x128xf32>
    %7 = arith.addf %3, %6 : vector<128x128xf32>
    %c0_6 = arith.constant 0 : index
    %c0_7 = arith.constant 0 : index
    %8 = vector.load %arg8[%c0_6, %c0_7] : memref<128x128xf32, #tpu.memory_space<vmem>>, vector<128x128xf32>
    tpu.vector_store %arg8[%c0_6, %c0_7], %7 {strides = array<i32>} : memref<128x128xf32, #tpu.memory_space<vmem>>, vector<128x128xf32>,
    %c0_i32_8 = arith.constant 0 : i32
    %9 = arith.cmpi eq, %arg2, %c0_i32_8 : i32
    %10 = arith.extui %9 : i1 to i32
    %c0_i32_9 = arith.constant 0 : i32
    %11 = arith.cmpi ne, %10, %c0_i32_9 : i32
    scf.if %11 {
      %c0_10 = arith.constant 0 : index
      %c0_11 = arith.constant 0 : index
      %12 = vector.load %arg8[%c0_10, %c0_11] : memref<128x128xf32, #tpu.memory_space<vmem>>, vector<128x128xf32>
      %c0_12 = arith.constant 0 : index
      %c0_13 = arith.constant 0 : index
      %13 = vector.load %arg5[%c0_12, %c0_13] : memref<1x128xf32, #tpu.memory_space<vmem>>, vector<1x128xf32>
      %14 = vector.broadcast %13 : vector<1x128xf32> to vector<128x128xf32>
      %15 = arith.mulf %12, %14 : vector<128x128xf32>
      %c0_14 = arith.constant 0 : index
      %c0_15 = arith.constant 0 : index
      %16 = vector.load %arg6[%c0_14, %c0_15] : memref<1x128xf32, #tpu.memory_space<vmem>>, vector<1x128xf32>
      %17 = vector.broadcast %16 : vector<1x128xf32> to vector<128x128xf32>
      %18 = arith.addf %15, %17 : vector<128x128xf32>
      %cst_16 = arith.constant 0.000000e+00 : f32
      %19 = vector.broadcast %cst_16 : f32 to vector<128x128xf32>
      %20 = arith.maximumf %18, %19 : vector<128x128xf32>
      %21 = arith.truncf %20 : vector<128x128xf32> to vector<128x128xbf16>
      %c0_17 = arith.constant 0 : index
      %c0_18 = arith.constant 0 : index
      %22 = vector.load %arg7[%c0_17, %c0_18] : memref<128x128xbf16, #tpu.memory_space<vmem>>, vector<128x128xbf16>
      tpu.vector_store %arg7[%c0_17, %c0_18], %21 {strides = array<i32>} : memref<128x128xbf16, #tpu.memory_space<vmem>>, vector<128x128xbf16>,
    } else {
    }
    return
  }
  func.func @transform_0(%arg0: i32, %arg1: i32, %arg2: i32) -> (i32, i32) {
    %c0_i32 = arith.constant 0 : i32
    return %arg0, %arg2 : i32, i32
  }
  func.func @transform_1(%arg0: i32, %arg1: i32, %arg2: i32) -> (i32, i32) {
    %c0_i32 = arith.constant 0 : i32
    return %arg2, %arg1 : i32, i32
  }
  func.func @transform_2(%arg0: i32, %arg1: i32, %arg2: i32) -> (i32, i32) {
    %c0_i32 = arith.constant 0 : i32
    %c0_i32_0 = arith.constant 0 : i32
    return %c0_i32, %arg1 : i32, i32
  }
  func.func @transform_3(%arg0: i32, %arg1: i32, %arg2: i32) -> (i32, i32) {
    %c0_i32 = arith.constant 0 : i32
    %c0_i32_0 = arith.constant 0 : i32
    return %c0_i32, %arg1 : i32, i32
  }
  func.func @transform_4(%arg0: i32, %arg1: i32, %arg2: i32) -> (i32, i32) {
    %c0_i32 = arith.constant 0 : i32
    return %arg0, %arg1 : i32, i32
  }
}

</mosaic_0001>

<llo_original>
// kernel: tpu_custom_call.1
$region0: #{tpu_custom_call.1}
  #allocation0 [shape = 'u32[]', space=smem, size = 0x4, offset = 0x4, fixed_abs, tag = 'smem constant byte address 0x4 - core index']
  #allocation1 [shape = 'u32[144,128]{1,0:T(1,128)}', space=vmem, size = 0x12000, scoped, tag = 'internal scratch']
  #allocation2 [shape = 'f32[128,128]{1,0:T(8,128)}', space=vmem, size = 0x10000, scoped, tag = 'scratch operand']
  %s0 = inlined_call_operand.hbm [shape: bf16[128,256], index: 0, kind: input, shape index: {}]
  %s1 = inlined_call_operand.hbm [shape: bf16[256,128], index: 1, kind: input, shape index: {}]
  %s2 = inlined_call_operand.vmem [shape: f32[1,128], index: 2, kind: input, shape index: {}]
  %s3 = inlined_call_operand.vmem [shape: f32[1,128], index: 3, kind: input, shape index: {}]
  %s4 = inlined_call_operand.hbm [shape: bf16[128,128], index: 4, kind: output, shape index: {}]
  %s5 = sld [smem:[#allocation0]]
  $region42: #{tpu_custom_call.1} parent=0
    _
  %s7 = ssub.s32 1, %s5
  %s8 = scalar_select 0, %s7, %s5
  $region1: #{tpu_custom_call.1} parent=0
    #allocation3 [shape = 'u8[65536]{0}', space=vmem, size = 0x10000, scoped, tag = 'input window, operand 0, single buffered']
    #allocation4 [shape = 's32[1]{0}', space=sflag, size = 0x4, scoped, tag = 'scoped memory for tpu_custom_call.1']
    #allocation5 [shape = 's32[1]{0}', space=sflag, size = 0x4, scoped, tag = 'scoped memory for tpu_custom_call.1']
    #allocation6 [shape = 'u8[65536]{0}', space=vmem, size = 0x10000, scoped, tag = 'input window, operand 1, single buffered']
    #allocation7 [shape = 's32[1]{0}', space=sflag, size = 0x4, scoped, tag = 'scoped memory for tpu_custom_call.1']
    #allocation8 [shape = 'u8[32768]{0}', space=vmem, size = 0x8000, scoped, tag = 'output window, operand 0, single buffered']
    %9 = vsyncpa [#allocation4], 0
    %10 = vsyncpa [#allocation7], 0
    %11 = vsyncpa [#allocation5], 0
    // Predicated region
    $region2: #{tpu_custom_call.1} parent=1 // pred_check
      _
    $region3: #{tpu_custom_call.1} parent=1 // pred_check_branch
      %13 = sbr.rel (0) target = $region5
    $region4: #{tpu_custom_call.1} parent=1 // pred_region
      %s15 = ssub.s32 2048, 2048
      %16 = vsyncadd [#allocation4], %s15
      %s17 = sshll.u32 [#allocation3], 4
      %s18 = int_to_ptr.vmem [resolvable:$true] %s17
      %23 = dma.hbm_to_vmem [thread:$0]  %s0, 2048, %s18, [#allocation4], 128, 128, 8
    $region5: #{tpu_custom_call.1} parent=1 // pred_fallthru
      _
    // Predicated region
    $region6: #{tpu_custom_call.1} parent=1 // pred_check
      _
    $region7: #{tpu_custom_call.1} parent=1 // pred_check_branch
      %25 = sbr.rel (0) target = $region9
    $region8: #{tpu_custom_call.1} parent=1 // pred_region
      %s27 = ssub.s32 2048, 2048
      %28 = vsyncadd [#allocation7], %s27
      %s29 = sshll.u32 [#allocation6], 4
      %s30 = int_to_ptr.vmem [resolvable:$true] %s29
      %35 = dma.hbm_to_vmem [thread:$0]  %s1, 2048, %s30, [#allocation7], 64, 64, 4
    $region9: #{tpu_custom_call.1} parent=1 // pred_fallthru
      _
    // Predicated region
    $region10: #{tpu_custom_call.1} parent=1 // pred_check
      _
    $region11: #{tpu_custom_call.1} parent=1 // pred_check_branch
      %37 = sbr.rel (0) target = $region13
    $region12: #{tpu_custom_call.1} parent=1 // pred_region
      _
    $region13: #{tpu_custom_call.1} parent=1 // pred_fallthru
      _
    // Predicated region
    $region14: #{tpu_custom_call.1} parent=1 // pred_check
      _
    $region15: #{tpu_custom_call.1} parent=1 // pred_check_branch
      %39 = sbr.rel (0) target = $region17
    $region16: #{tpu_custom_call.1} parent=1 // pred_region
      _
    $region17: #{tpu_custom_call.1} parent=1 // pred_fallthru
      _
    // Predicated region
    $region18: #{tpu_custom_call.1} parent=1 // pred_check
      _
    $region19: #{tpu_custom_call.1} parent=1 // pred_check_branch
      %41 = sbr.rel (0) target = $region21
    $region20: #{tpu_custom_call.1} parent=1 // pred_region
      %42 = dma.done [#allocation4], 2048
    $region21: #{tpu_custom_call.1} parent=1 // pred_fallthru
      _
    // Predicated region
    $region22: #{tpu_custom_call.1} parent=1 // pred_check
      _
    $region23: #{tpu_custom_call.1} parent=1 // pred_check_branch
      %44 = sbr.rel (0) target = $region25
    $region24: #{tpu_custom_call.1} parent=1 // pred_region
      %45 = dma.done [#allocation7], 2048
    $region25: #{tpu_custom_call.1} parent=1 // pred_fallthru
      _
    %p47 = scmp.eq.s32.totalorder 0, 0
    // Predicated region
    $region26: #{tpu_custom_call.1} parent=1 // pred_check
      %p48 = pneg %p47
    $region27: #{tpu_custom_call.1} parent=1 // pred_check_branch
      %50 = sbr.rel (%p48) target = $region29
    $region28: #{tpu_custom_call.1} parent=1 // pred_region
      %51 = vst [vmem:[#allocation2] sm:$0xff] 0.0
      %52 = vst [vmem:[#allocation2 + $0x8] sm:$0xff] 0.0
      %53 = vst [vmem:[#allocation2 + $0x10] sm:$0xff] 0.0
      %54 = vst [vmem:[#allocation2 + $0x18] sm:$0xff] 0.0
      %55 = vst [vmem:[#allocation2 + $0x20] sm:$0xff] 0.0
      %56 = vst [vmem:[#allocation2 + $0x28] sm:$0xff] 0.0
      %57 = vst [vmem:[#allocation2 + $0x30] sm:$0xff] 0.0
      %58 = vst [vmem:[#allocation2 + $0x38] sm:$0xff] 0.0
      %59 = vst [vmem:[#allocation2 + $0x40] sm:$0xff] 0.0
      %60 = vst [vmem:[#allocation2 + $0x48] sm:$0xff] 0.0
      %61 = vst [vmem:[#allocation2 + $0x50] sm:$0xff] 0.0
      %62 = vst [vmem:[#allocation2 + $0x58] sm:$0xff] 0.0
      %63 = vst [vmem:[#allocation2 + $0x60] sm:$0xff] 0.0
      %64 = vst [vmem:[#allocation2 + $0x68] sm:$0xff] 0.0
      %65 = vst [vmem:[#allocation2 + $0x70] sm:$0xff] 0.0
      %66 = vst [vmem:[#allocation2 + $0x78] sm:$0xff] 0.0
    $region29: #{tpu_custom_call.1} parent=1 // pred_fallthru
      _
    %v67 = vld [vmem:[#allocation2] sm:$0xff]
    %v68 = vld [vmem:[#allocation2 + $0x8] sm:$0xff]
    %v69 = vld [vmem:[#allocation2 + $0x10] sm:$0xff]
    %v70 = vld [vmem:[#allocation2 + $0x18] sm:$0xff]
    %v71 = vld [vmem:[#allocation2 + $0x20] sm:$0xff]
    %v72 = vld [vmem:[#allocation2 + $0x28] sm:$0xff]
    %v73 = vld [vmem:[#allocation2 + $0x30] sm:$0xff]
    %v74 = vld [vmem:[#allocation2 + $0x38] sm:$0xff]
    %v75 = vld [vmem:[#allocation2 + $0x40] sm:$0xff]
    %v76 = vld [vmem:[#allocation2 + $0x48] sm:$0xff]
    %v77 = vld [vmem:[#allocation2 + $0x50] sm:$0xff]
    %v78 = vld [vmem:[#allocation2 + $0x58] sm:$0xff]
    %v79 = vld [vmem:[#allocation2 + $0x60] sm:$0xff]
    %v80 = vld [vmem:[#allocation2 + $0x68] sm:$0xff]
    %v81 = vld [vmem:[#allocation2 + $0x70] sm:$0xff]
    %v82 = vld [vmem:[#allocation2 + $0x78] sm:$0xff]
    %v83 = vld [vmem:[#allocation3] sm:$0xff]
    %v84 = vld [vmem:[#allocation3 + $0x8] sm:$0xff]
    %v85 = vld [vmem:[#allocation3 + $0x10] sm:$0xff]
    %v86 = vld [vmem:[#allocation3 + $0x18] sm:$0xff]
    %v87 = vld [vmem:[#allocation3 + $0x20] sm:$0xff]
    %v88 = vld [vmem:[#allocation3 + $0x28] sm:$0xff]
    %v89 = vld [vmem:[#allocation3 + $0x30] sm:$0xff]
    %v90 = vld [vmem:[#allocation3 + $0x38] sm:$0xff]
    %v91 = vld [vmem:[#allocation3 + $0x40] sm:$0xff]
    %v92 = vld [vmem:[#allocation3 + $0x48] sm:$0xff]
    %v93 = vld [vmem:[#allocation3 + $0x50] sm:$0xff]
    %v94 = vld [vmem:[#allocation3 + $0x58] sm:$0xff]
    %v95 = vld [vmem:[#allocation3 + $0x60] sm:$0xff]
    %v96 = vld [vmem:[#allocation3 + $0x68] sm:$0xff]
    %v97 = vld [vmem:[#allocation3 + $0x70] sm:$0xff]
    %v98 = vld [vmem:[#allocation3 + $0x78] sm:$0xff]
    %v99 = vld [vmem:[#allocation6] sm:$0xf]
    %v100 = vld [vmem:[#allocation6 + $0x4] sm:$0xf]
    %v101 = vld [vmem:[#allocation6 + $0x8] sm:$0xf]
    %v102 = vld [vmem:[#allocation6 + $0xc] sm:$0xf]
    %v103 = vld [vmem:[#allocation6 + $0x10] sm:$0xf]
    %v104 = vld [vmem:[#allocation6 + $0x14] sm:$0xf]
    %v105 = vld [vmem:[#allocation6 + $0x18] sm:$0xf]
    %v106 = vld [vmem:[#allocation6 + $0x1c] sm:$0xf]
    %v107 = vld [vmem:[#allocation6 + $0x20] sm:$0xf]
    %v108 = vld [vmem:[#allocation6 + $0x24] sm:$0xf]
    %v109 = vld [vmem:[#allocation6 + $0x28] sm:$0xf]
    %v110 = vld [vmem:[#allocation6 + $0x2c] sm:$0xf]
    %v111 = vld [vmem:[#allocation6 + $0x30] sm:$0xf]
    %v112 = vld [vmem:[#allocation6 + $0x34] sm:$0xf]
    %v113 = vld [vmem:[#allocation6 + $0x38] sm:$0xf]
    %v114 = vld [vmem:[#allocation6 + $0x3c] sm:$0xf]
    %v115 = vld [vmem:[#allocation6 + $0x40] sm:$0xf]
    %v116 = vld [vmem:[#allocation6 + $0x44] sm:$0xf]
    %v117 = vld [vmem:[#allocation6 + $0x48] sm:$0xf]
    %v118 = vld [vmem:[#allocation6 + $0x4c] sm:$0xf]
    %v119 = vld [vmem:[#allocation6 + $0x50] sm:$0xf]
    %v120 = vld [vmem:[#allocation6 + $0x54] sm:$0xf]
    %v121 = vld [vmem:[#allocation6 + $0x58] sm:$0xf]
    %v122 = vld [vmem:[#allocation6 + $0x5c] sm:$0xf]
    %v123 = vld [vmem:[#allocation6 + $0x60] sm:$0xf]
    %v124 = vld [vmem:[#allocation6 + $0x64] sm:$0xf]
    %v125 = vld [vmem:[#allocation6 + $0x68] sm:$0xf]
    %v126 = vld [vmem:[#allocation6 + $0x6c] sm:$0xf]
    %v127 = vld [vmem:[#allocation6 + $0x70] sm:$0xf]
    %v128 = vld [vmem:[#allocation6 + $0x74] sm:$0xf]
    %v129 = vld [vmem:[#allocation6 + $0x78] sm:$0xf]
    %v130 = vld [vmem:[#allocation6 + $0x7c] sm:$0xf]
    %v147 = vunpack.c.l.b16 %v83
    %v148 = vunpack.c.h.b16 %v83
    %v149 = vunpack.c.l.b16 %v84
    %v150 = vunpack.c.h.b16 %v84
    %v151 = vunpack.c.l.b16 %v85
    %v152 = vunpack.c.h.b16 %v85
    %v153 = vunpack.c.l.b16 %v86
    %v154 = vunpack.c.h.b16 %v86
    %v155 = vunpack.c.l.b16 %v87
    %v156 = vunpack.c.h.b16 %v87
    %v157 = vunpack.c.l.b16 %v88
    %v158 = vunpack.c.h.b16 %v88
    %v159 = vunpack.c.l.b16 %v89
    %v160 = vunpack.c.h.b16 %v89
    %v161 = vunpack.c.l.b16 %v90
    %v162 = vunpack.c.h.b16 %v90
    %v163 = vunpack.c.l.b16 %v91
    %v164 = vunpack.c.h.b16 %v91
    %v165 = vunpack.c.l.b16 %v92
    %v166 = vunpack.c.h.b16 %v92
    %v167 = vunpack.c.l.b16 %v93
    %v168 = vunpack.c.h.b16 %v93
    %v169 = vunpack.c.l.b16 %v94
    %v170 = vunpack.c.h.b16 %v94
    %v171 = vunpack.c.l.b16 %v95
    %v172 = vunpack.c.h.b16 %v95
    %v173 = vunpack.c.l.b16 %v96
    %v174 = vunpack.c.h.b16 %v96
    %v175 = vunpack.c.l.b16 %v97
    %v176 = vunpack.c.h.b16 %v97
    %v177 = vunpack.c.l.b16 %v98
    %v178 = vunpack.c.h.b16 %v98
    %v179 = vpack.c.b16 %v149, %v147
    %v180 = vpack.c.b16 %v150, %v148
    %v181 = vpack.c.b16 %v153, %v151
    %v182 = vpack.c.b16 %v154, %v152
    %v183 = vpack.c.b16 %v157, %v155
    %v184 = vpack.c.b16 %v158, %v156
    %v185 = vpack.c.b16 %v161, %v159
    %v186 = vpack.c.b16 %v162, %v160
    %v187 = vpack.c.b16 %v165, %v163
    %v188 = vpack.c.b16 %v166, %v164
    %v189 = vpack.c.b16 %v169, %v167
    %v190 = vpack.c.b16 %v170, %v168
    %v191 = vpack.c.b16 %v173, %v171
    %v192 = vpack.c.b16 %v174, %v172
    %v193 = vpack.c.b16 %v177, %v175
    %v194 = vpack.c.b16 %v178, %v176
    %v243 = vunpack.c.l.b16 %v99
    %v244 = vunpack.c.l.b16 %v100
    %v245 = vunpack.c.l.b16 %v101
    %v246 = vunpack.c.l.b16 %v102
    %v247 = vunpack.c.l.b16 %v103
    %v248 = vunpack.c.l.b16 %v104
    %v249 = vunpack.c.l.b16 %v105
    %v250 = vunpack.c.l.b16 %v106
    %v251 = vunpack.c.l.b16 %v107
    %v252 = vunpack.c.l.b16 %v108
    %v253 = vunpack.c.l.b16 %v109
    %v254 = vunpack.c.l.b16 %v110
    %v255 = vunpack.c.l.b16 %v111
    %v256 = vunpack.c.l.b16 %v112
    %v257 = vunpack.c.l.b16 %v113
    %v258 = vunpack.c.l.b16 %v114
    %v259 = vunpack.c.l.b16 %v115
    %v260 = vunpack.c.l.b16 %v116
    %v261 = vunpack.c.l.b16 %v117
    %v262 = vunpack.c.l.b16 %v118
    %v263 = vunpack.c.l.b16 %v119
    %v264 = vunpack.c.l.b16 %v120
    %v265 = vunpack.c.l.b16 %v121
    %v266 = vunpack.c.l.b16 %v122
    %v267 = vunpack.c.l.b16 %v123
    %v268 = vunpack.c.l.b16 %v124
    %v269 = vunpack.c.l.b16 %v125
    %v270 = vunpack.c.l.b16 %v126
    %v271 = vunpack.c.l.b16 %v127
    %v272 = vunpack.c.l.b16 %v128
    %v273 = vunpack.c.l.b16 %v129
    %v274 = vunpack.c.l.b16 %v130
    %v275 = vpack.c.b16 %v244, %v243
    %v276 = vpack.c.b16 %v246, %v245
    %v277 = vpack.c.b16 %v248, %v247
    %v278 = vpack.c.b16 %v250, %v249
    %v279 = vpack.c.b16 %v252, %v251
    %v280 = vpack.c.b16 %v254, %v253
    %v281 = vpack.c.b16 %v256, %v255
    %v282 = vpack.c.b16 %v258, %v257
    %v283 = vpack.c.b16 %v260, %v259
    %v284 = vpack.c.b16 %v262, %v261
    %v285 = vpack.c.b16 %v264, %v263
    %v286 = vpack.c.b16 %v266, %v265
    %v287 = vpack.c.b16 %v268, %v267
    %v288 = vpack.c.b16 %v270, %v269
    %v289 = vpack.c.b16 %v272, %v271
    %v290 = vpack.c.b16 %v274, %v273
    %307 = vmatprep.subr.bf16.mxu0 0
    %308 = vmatpush1.bf16.msra.mxu0 %v282
    %309 = vmatprep.subr.bf16.mxu0 0
    %310 = vmatpush1.bf16.msra.mxu0 %v281
    %311 = vmatprep.subr.bf16.mxu0 0
    %312 = vmatpush1.bf16.msra.mxu0 %v280
    %313 = vmatprep.subr.bf16.mxu0 0
    %314 = vmatpush1.bf16.msra.mxu0 %v279
    %315 = vmatprep.subr.bf16.mxu0 0
    %316 = vmatpush1.bf16.msra.mxu0 %v278
    %317 = vmatprep.subr.bf16.mxu0 0
    %318 = vmatpush1.bf16.msra.mxu0 %v277
    %319 = vmatprep.subr.bf16.mxu0 0
    %320 = vmatpush1.bf16.msra.mxu0 %v276
    %321 = vmatprep.subr.bf16.mxu0 0
    %322 = vmatpush1.bf16.msra.mxu0 %v275
    %323 = vmatprep.subr.bf16.mxu0 0
    %324 = vmatpush2.bf16.msra.mxu0 %v290
    %325 = vmatprep.subr.bf16.mxu0 0
    %326 = vmatpush2.bf16.msra.mxu0 %v289
    %327 = vmatprep.subr.bf16.mxu0 0
    %328 = vmatpush2.bf16.msra.mxu0 %v288
    %329 = vmatprep.subr.bf16.mxu0 0
    %330 = vmatpush2.bf16.msra.mxu0 %v287
    %331 = vmatprep.subr.bf16.mxu0 0
    %332 = vmatpush2.bf16.msra.mxu0 %v286
    %333 = vmatprep.subr.bf16.mxu0 0
    %334 = vmatpush2.bf16.msra.mxu0 %v285
    %335 = vmatprep.subr.bf16.mxu0 0
    %336 = vmatpush2.bf16.msra.mxu0 %v284
    %337 = vmatprep.subr.bf16.mxu0 0
    %338 = vmatpush2.bf16.msra.mxu0 %v283
    %339 = vmatprep.mubr.bf16.mxu0 %v180
    %340 = vmatmul.mubr.bf16.gmra.mxu0 %v179
    %v341 = vpop.f32.mrf.mxu0
    %v342 = vadd.f32 0.0, %v341
    %v343 = vpop.f32.mrf.mxu0
    %v344 = vpop.f32.mrf.mxu0
    %v345 = vadd.f32 0.0, %v344
    %v346 = vpop.f32.mrf.mxu0
    %347 = vmatprep.mubr.bf16.mxu0 %v182
    %348 = vmatmul.mubr.bf16.gmra.mxu0 %v181
    %v349 = vpop.f32.mrf.mxu0
    %v350 = vadd.f32 0.0, %v349
    %v351 = vpop.f32.mrf.mxu0
    %v352 = vpop.f32.mrf.mxu0
    %v353 = vadd.f32 0.0, %v352
    %v354 = vpop.f32.mrf.mxu0
    %355 = vmatprep.mubr.bf16.mxu0 %v184
    %356 = vmatmul.mubr.bf16.gmra.mxu0 %v183
    %v357 = vpop.f32.mrf.mxu0
    %v358 = vadd.f32 0.0, %v357
    %v359 = vpop.f32.mrf.mxu0
    %v360 = vpop.f32.mrf.mxu0
    %v361 = vadd.f32 0.0, %v360
    %v362 = vpop.f32.mrf.mxu0
    %363 = vmatprep.mubr.bf16.mxu0 %v186
    %364 = vmatmul.mubr.bf16.gmra.mxu0 %v185
    %v365 = vpop.f32.mrf.mxu0
    %v366 = vadd.f32 0.0, %v365
    %v367 = vpop.f32.mrf.mxu0
    %v368 = vpop.f32.mrf.mxu0
    %v369 = vadd.f32 0.0, %v368
    %v370 = vpop.f32.mrf.mxu0
    %371 = vmatprep.mubr.bf16.mxu0 %v188
    %372 = vmatmul.mubr.bf16.gmra.mxu0 %v187
    %v373 = vpop.f32.mrf.mxu0
    %v374 = vadd.f32 0.0, %v373
    %v375 = vpop.f32.mrf.mxu0
    %v376 = vpop.f32.mrf.mxu0
    %v377 = vadd.f32 0.0, %v376
    %v378 = vpop.f32.mrf.mxu0
    %379 = vmatprep.mubr.bf16.mxu0 %v190
    %380 = vmatmul.mubr.bf16.gmra.mxu0 %v189
    %v381 = vpop.f32.mrf.mxu0
    %v382 = vadd.f32 0.0, %v381
    %v383 = vpop.f32.mrf.mxu0
    %v384 = vpop.f32.mrf.mxu0
    %v385 = vadd.f32 0.0, %v384
    %v386 = vpop.f32.mrf.mxu0
    %387 = vmatprep.mubr.bf16.mxu0 %v192
    %388 = vmatmul.mubr.bf16.gmra.mxu0 %v191
    %v389 = vpop.f32.mrf.mxu0
    %v390 = vadd.f32 0.0, %v389
    %v391 = vpop.f32.mrf.mxu0
    %v392 = vpop.f32.mrf.mxu0
    %v393 = vadd.f32 0.0, %v392
    %v394 = vpop.f32.mrf.mxu0
    %395 = vmatprep.mubr.bf16.mxu0 %v194
    %396 = vmatmul.mubr.bf16.gmra.mxu0 %v193
    %v397 = vpop.f32.mrf.mxu0
    %v398 = vadd.f32 0.0, %v397
    %v399 = vpop.f32.mrf.mxu0
    %v400 = vpop.f32.mrf.mxu0
    %v401 = vadd.f32 0.0, %v400
    %v402 = vpop.f32.mrf.mxu0
    %403 = vdwg.mxu0
    %v404 = vadd.f32 %v67, %v342
    %v405 = vadd.f32 %v68, %v345
    %v406 = vadd.f32 %v69, %v350
    %v407 = vadd.f32 %v70, %v353
    %v408 = vadd.f32 %v71, %v358
    %v409 = vadd.f32 %v72, %v361
    %v410 = vadd.f32 %v73, %v366
    %v411 = vadd.f32 %v74, %v369
    %v412 = vadd.f32 %v75, %v374
    %v413 = vadd.f32 %v76, %v377
    %v414 = vadd.f32 %v77, %v382
    %v415 = vadd.f32 %v78, %v385
    %v416 = vadd.f32 %v79, %v390
    %v417 = vadd.f32 %v80, %v393
    %v418 = vadd.f32 %v81, %v398
    %v419 = vadd.f32 %v82, %v401
    %420 = vst [vmem:[#allocation2] sm:$0xff] %v404
    %421 = vst [vmem:[#allocation2 + $0x8] sm:$0xff] %v405
    %422 = vst [vmem:[#allocation2 + $0x10] sm:$0xff] %v406
    %423 = vst [vmem:[#allocation2 + $0x18] sm:$0xff] %v407
    %424 = vst [vmem:[#allocation2 + $0x20] sm:$0xff] %v408
    %425 = vst [vmem:[#allocation2 + $0x28] sm:$0xff] %v409
    %426 = vst [vmem:[#allocation2 + $0x30] sm:$0xff] %v410
    %427 = vst [vmem:[#allocation2 + $0x38] sm:$0xff] %v411
    %428 = vst [vmem:[#allocation2 + $0x40] sm:$0xff] %v412
    %429 = vst [vmem:[#allocation2 + $0x48] sm:$0xff] %v413
    %430 = vst [vmem:[#allocation2 + $0x50] sm:$0xff] %v414
    %431 = vst [vmem:[#allocation2 + $0x58] sm:$0xff] %v415
    %432 = vst [vmem:[#allocation2 + $0x60] sm:$0xff] %v416
    %433 = vst [vmem:[#allocation2 + $0x68] sm:$0xff] %v417
    %434 = vst [vmem:[#allocation2 + $0x70] sm:$0xff] %v418
    %435 = vst [vmem:[#allocation2 + $0x78] sm:$0xff] %v419
    // Predicated region
    $region30: #{tpu_custom_call.1} parent=1 // pred_check
      %p436 = pneg %p47
    $region31: #{tpu_custom_call.1} parent=1 // pred_check_branch
      %438 = sbr.rel (%p436) target = $region33
    $region32: #{tpu_custom_call.1} parent=1 // pred_region
      %v439 = vld [vmem:[#allocation2] sm:$0xff]
      %v440 = vld [vmem:[#allocation2 + $0x8] sm:$0xff]
      %v441 = vld [vmem:[#allocation2 + $0x10] sm:$0xff]
      %v442 = vld [vmem:[#allocation2 + $0x18] sm:$0xff]
      %v443 = vld [vmem:[#allocation2 + $0x20] sm:$0xff]
      %v444 = vld [vmem:[#allocation2 + $0x28] sm:$0xff]
      %v445 = vld [vmem:[#allocation2 + $0x30] sm:$0xff]
      %v446 = vld [vmem:[#allocation2 + $0x38] sm:$0xff]
      %v447 = vld [vmem:[#allocation2 + $0x40] sm:$0xff]
      %v448 = vld [vmem:[#allocation2 + $0x48] sm:$0xff]
      %v449 = vld [vmem:[#allocation2 + $0x50] sm:$0xff]
      %v450 = vld [vmem:[#allocation2 + $0x58] sm:$0xff]
      %v451 = vld [vmem:[#allocation2 + $0x60] sm:$0xff]
      %v452 = vld [vmem:[#allocation2 + $0x68] sm:$0xff]
      %v453 = vld [vmem:[#allocation2 + $0x70] sm:$0xff]
      %v454 = vld [vmem:[#allocation2 + $0x78] sm:$0xff]
      %v455 = vld [vmem:[%s2] sm:$0x1]
      %v457 = vlaneseq
      %v458 = vshrl.u32 %v457, 7
      %v459 = vsub.s32 0, %v458
      %v460 = vrot.slane %v455, %v459
      %v462 = vmul.f32 %v439, %v460
      %v463 = vmul.f32 %v440, %v460
      %v464 = vmul.f32 %v441, %v460
      %v465 = vmul.f32 %v442, %v460
      %v466 = vmul.f32 %v443, %v460
      %v467 = vmul.f32 %v444, %v460
      %v468 = vmul.f32 %v445, %v460
      %v469 = vmul.f32 %v446, %v460
      %v470 = vmul.f32 %v447, %v460
      %v471 = vmul.f32 %v448, %v460
      %v472 = vmul.f32 %v449, %v460
      %v473 = vmul.f32 %v450, %v460
      %v474 = vmul.f32 %v451, %v460
      %v475 = vmul.f32 %v452, %v460
      %v476 = vmul.f32 %v453, %v460
      %v477 = vmul.f32 %v454, %v460
      %v478 = vld [vmem:[%s3] sm:$0x1]
      %v480 = vlaneseq
      %v481 = vshrl.u32 %v480, 7
      %v482 = vsub.s32 0, %v481
      %v483 = vrot.slane %v478, %v482
      %v485 = vadd.f32 %v462, %v483
      %v486 = vadd.f32 %v463, %v483
      %v487 = vadd.f32 %v464, %v483
      %v488 = vadd.f32 %v465, %v483
      %v489 = vadd.f32 %v466, %v483
      %v490 = vadd.f32 %v467, %v483
      %v491 = vadd.f32 %v468, %v483
      %v492 = vadd.f32 %v469, %v483
      %v493 = vadd.f32 %v470, %v483
      %v494 = vadd.f32 %v471, %v483
      %v495 = vadd.f32 %v472, %v483
      %v496 = vadd.f32 %v473, %v483
      %v497 = vadd.f32 %v474, %v483
      %v498 = vadd.f32 %v475, %v483
      %v499 = vadd.f32 %v476, %v483
      %v500 = vadd.f32 %v477, %v483
      %v501 = vmax.f32 %v485, 0.0
      %v502 = vmax.f32 %v486, 0.0
      %v503 = vmax.f32 %v487, 0.0
      %v504 = vmax.f32 %v488, 0.0
      %v505 = vmax.f32 %v489, 0.0
      %v506 = vmax.f32 %v490, 0.0
      %v507 = vmax.f32 %v491, 0.0
      %v508 = vmax.f32 %v492, 0.0
      %v509 = vmax.f32 %v493, 0.0
      %v510 = vmax.f32 %v494, 0.0
      %v511 = vmax.f32 %v495, 0.0
      %v512 = vmax.f32 %v496, 0.0
      %v513 = vmax.f32 %v497, 0.0
      %v514 = vmax.f32 %v498, 0.0
      %v515 = vmax.f32 %v499, 0.0
      %v516 = vmax.f32 %v500, 0.0
      %v517 = vpack.c.bf16 %v502, %v501
      %v518 = vpack.c.bf16 %v504, %v503
      %v519 = vpack.c.bf16 %v506, %v505
      %v520 = vpack.c.bf16 %v508, %v507
      %v521 = vpack.c.bf16 %v510, %v509
      %v522 = vpack.c.bf16 %v512, %v511
      %v523 = vpack.c.bf16 %v514, %v513
      %v524 = vpack.c.bf16 %v516, %v515
      %v533 = vunpack.c.l.b16 %v517
      %v534 = vunpack.c.h.b16 %v517
      %v535 = vunpack.c.l.b16 %v518
      %v536 = vunpack.c.h.b16 %v518
      %v537 = vunpack.c.l.b16 %v519
      %v538 = vunpack.c.h.b16 %v519
      %v539 = vunpack.c.l.b16 %v520
      %v540 = vunpack.c.h.b16 %v520
      %v541 = vunpack.c.l.b16 %v521
      %v542 = vunpack.c.h.b16 %v521
      %v543 = vunpack.c.l.b16 %v522
      %v544 = vunpack.c.h.b16 %v522
      %v545 = vunpack.c.l.b16 %v523
      %v546 = vunpack.c.h.b16 %v523
      %v547 = vunpack.c.l.b16 %v524
      %v548 = vunpack.c.h.b16 %v524
      %v549 = vpack.c.b16 %v533, %v533
      %v550 = vpack.c.b16 %v534, %v534
      %v551 = vpack.c.b16 %v535, %v535
      %v552 = vpack.c.b16 %v536, %v536
      %v553 = vpack.c.b16 %v537, %v537
      %v554 = vpack.c.b16 %v538, %v538
      %v555 = vpack.c.b16 %v539, %v539
      %v556 = vpack.c.b16 %v540, %v540
      %v557 = vpack.c.b16 %v541, %v541
      %v558 = vpack.c.b16 %v542, %v542
      %v559 = vpack.c.b16 %v543, %v543
      %v560 = vpack.c.b16 %v544, %v544
      %v561 = vpack.c.b16 %v545, %v545
      %v562 = vpack.c.b16 %v546, %v546
      %v563 = vpack.c.b16 %v547, %v547
      %v564 = vpack.c.b16 %v548, %v548
      %581 = vst [vmem:[#allocation8] sm:$0xf] %v549
      %582 = vst [vmem:[#allocation8 + $0x4] sm:$0xf] %v550
      %583 = vst [vmem:[#allocation8 + $0x8] sm:$0xf] %v551
      %584 = vst [vmem:[#allocation8 + $0xc] sm:$0xf] %v552
      %585 = vst [vmem:[#allocation8 + $0x10] sm:$0xf] %v553
      %586 = vst [vmem:[#allocation8 + $0x14] sm:$0xf] %v554
      %587 = vst [vmem:[#allocation8 + $0x18] sm:$0xf] %v555
      %588 = vst [vmem:[#allocation8 + $0x1c] sm:$0xf] %v556
      %589 = vst [vmem:[#allocation8 + $0x20] sm:$0xf] %v557
      %590 = vst [vmem:[#allocation8 + $0x24] sm:$0xf] %v558
      %591 = vst [vmem:[#allocation8 + $0x28] sm:$0xf] %v559
      %592 = vst [vmem:[#allocation8 + $0x2c] sm:$0xf] %v560
      %593 = vst [vmem:[#allocation8 + $0x30] sm:$0xf] %v561
      %594 = vst [vmem:[#allocation8 + $0x34] sm:$0xf] %v562
      %595 = vst [vmem:[#allocation8 + $0x38] sm:$0xf] %v563
      %596 = vst [vmem:[#allocation8 + $0x3c] sm:$0xf] %v564
    $region33: #{tpu_custom_call.1} parent=1 // pred_fallthru
      _
    // Predicated region
    $region34: #{tpu_custom_call.1} parent=1 // pred_check
      _
    $region35: #{tpu_custom_call.1} parent=1 // pred_check_branch
      %598 = sbr.rel (0) target = $region37
    $region36: #{tpu_custom_call.1} parent=1 // pred_region
      %s600 = ssub.s32 1024, 1024
      %601 = vsyncadd [#allocation5], %s600
      %s602 = sshll.u32 [#allocation8], 4
      %s603 = int_to_ptr.vmem [resolvable:$true] %s602
      %608 = dma.vmem_to_hbm [thread:$0]  %s603, 1024, %s4, [#allocation5], 64, 64, 4
    $region37: #{tpu_custom_call.1} parent=1 // pred_fallthru
      _
    // Predicated region
    $region38: #{tpu_custom_call.1} parent=1 // pred_check
      _
    $region39: #{tpu_custom_call.1} parent=1 // pred_check_branch
      %610 = sbr.rel (0) target = $region41
    $region40: #{tpu_custom_call.1} parent=1 // pred_region
      %611 = dma.done [#allocation5], 1024
    $region41: #{tpu_custom_call.1} parent=1 // pred_fallthru
      _
    %612 = vsyncpa [#allocation4], 1
    %613 = vsyncpa [#allocation7], 1
    %614 = vsyncpa [#allocation5], 1

</llo_original>
